<compile_context>
chip_gen: v6e
topology: v6e:2x2x1
jax: 0.10.0
libtpu: 0.0.40
codegen_flags: <defaults>
</compile_context>

<pallas_src>
import math
import functools

import jax
import jax.numpy as jnp
from jax import lax
from jax.experimental import pallas as pl
from jax.experimental.pallas import tpu as pltpu

_MiB = 1024 * 1024


def _arcface_ce_kernel(logits_ref, labels_ref, out_ref, *,
                       n, tile_n, s, cos_m, sin_m, th, mm, need_mask):
    """One batch tile -> lane-dense (sum of CE, sum of ArcFace DenseCE)."""
    i = pl.program_id(0)

    x = logits_ref[...].astype(jnp.float32)          # (TN, C) f32
    lbl = labels_ref[...]                            # (TN, 1) int32
    tn, c = x.shape

    # One-hot target mask from integer labels (matches scatter_ in torch).
    class_idx = lax.broadcasted_iota(jnp.int32, (tn, c), 1)
    tmask = class_idx == lbl                         # (TN, C) bool

    # Per-row target logit -- the only place the one-hot is really consumed.
    x_t = jnp.sum(jnp.where(tmask, x, 0.0), axis=-1, keepdims=True)   # (TN,1)

    # Shared stabilizer for both log-sum-exps.
    m1 = jnp.max(x, axis=-1, keepdims=True)          # (TN, 1)

    # ---- plain cross entropy (nn.CrossEntropyLoss) on raw logits ----
    e1 = jnp.exp(x - m1)
    lse1 = jnp.log(jnp.sum(e1, axis=-1, keepdims=True)) + m1
    ce_per = lse1 - x_t                              # (TN, 1)

    # ---- ArcFace margin, computed only on the per-row target value ----
    cos_t = x_t
    # TODO(synk): most ArcFace impls clamp cos_t to [-1,1] before the sqrt;
    # the reference torch code does not, so neither do we (NaN if |x_t|>1).
    sin_t = jnp.sqrt(1.0 - cos_t * cos_t)
    phi_t = cos_t * cos_m - sin_t * sin_m
    phi_t = jnp.where(cos_t > th, phi_t, cos_t - mm)

    # ---- DenseCrossEntropy on the margin-adjusted logits, WITHOUT ever
    # materializing them.  Adjusted row = s*x off-target, s*phi_t at target.
    # Since phi_t <= cos_t <= m1, s*m1 is a valid stabilizer for the row.
    # Non-target sum uses a masked sum (no cancellation-prone subtraction).
    e2 = jnp.exp(s * (x - m1))
    sum_nt = jnp.sum(jnp.where(tmask, 0.0, e2), axis=-1, keepdims=True)
    lse2 = s * m1 + jnp.log(sum_nt + jnp.exp(s * (phi_t - m1)))
    af_per = lse2 - s * phi_t                        # (TN, 1)

    if need_mask:
        # Padded remainder rows: any NaN/Inf from DMA garbage stays row-local
        # (every reduction above is per-row), so a true select on the per-row
        # losses is sufficient -- no full-tile zeroing needed.
        row_id = i * tile_n + lax.broadcasted_iota(jnp.int32, (tn, 1), 0)
        row_valid = row_id < n                       # (TN, 1) bool
        ce_per = jnp.where(row_valid, ce_per, 0.0)
        af_per = jnp.where(row_valid, af_per, 0.0)

    # Lane-dense partial row: lane 0 = sum CE, lane 1 = sum ArcFace, rest 0.
    sum_ce = jnp.sum(ce_per)
    sum_af = jnp.sum(af_per)
    lane = lax.broadcasted_iota(jnp.int32, (1, 1, 128), 2)
    out_ref[...] = jnp.where(lane == 0, sum_ce,
                             jnp.where(lane == 1, sum_af, 0.0))


def _vmem_config():
    """Generation-aware VMEM working-set budget / limit / buffering depth."""
    try:
        cap = int(pltpu.get_tpu_info().vmem_capacity_bytes)
    except Exception:                       # not queryable: conservative v7x-safe default
        cap = 64 * _MiB
    vmem_limit = min(cap * 3 // 4, 96 * _MiB)   # 96 MiB on v5e/v6e, 48 MiB on v7x
    budget = vmem_limit // 2                    # ~48 MiB / ~24 MiB working set
    big_vmem = cap >= 100 * _MiB                # v5e / v6e (128 MiB physical)
    return budget, vmem_limit, big_vmem


def _row_align(itemsize):
    """Sublane alignment for the batch dim given the input packing."""
    return 8 * max(1, 4 // max(int(itemsize), 1))   # f32->8, bf16->16, int8->32


def _pick_tile_n(n, c, in_itemsize, vmem_budget_bytes, in_buffers, align):
    """Largest aligned batch tile fitting the VMEM budget.

    Per batch row:
      * logits tile: in_buffers pipeline buffers x in_itemsize bytes / class,
      * ~4 full-width f32 temporaries (f32 upcast, e1, e2, masked select),
      * labels block, lane-padded to 128 lanes x 4 B x 2 buffers.
    """
    bytes_per_row = c * (in_buffers * in_itemsize + 4 * 4) + 2 * 128 * 4
    tile = vmem_budget_bytes // max(bytes_per_row, 1)
    n_padded = -(-n // align) * align
    tile = min(tile, 1024, n_padded)
    tile = max(align, (tile // align) * align)
    return int(tile)


def arcface_cross_entropy(logits, labels, *, alpha=0.5, s=30.0, m=0.5,
                          tile_n=None):
    """logits: (N, C) f32/bf16 cosine logits, labels: (N,) int -> scalar f32."""
    n, c = logits.shape
    itemsize = logits.dtype.itemsize
    align = _row_align(itemsize)
    budget, vmem_limit, big_vmem = _vmem_config()
    in_buffers = 3 if big_vmem else 2

    n_padded = -(-n // align) * align
    if tile_n is None:
        tile_n = _pick_tile_n(n, c, itemsize, budget, in_buffers, align)
        # Keep at least 2 tiles so the ("parallel",) grid axis can be split
        # across both TensorCores on v7x (costs one ~0.35 us step elsewhere).
        if n_padded >= 2 * align:
            half = -(-((n_padded + 1) // 2) // align) * align
            tile_n = min(tile_n, half)
    tile_n = max(align, (int(tile_n) // align) * align)
    num_tiles = -(-n // tile_n)                 # remainder handled by masking

    cos_m = math.cos(m)
    sin_m = math.sin(m)
    th = math.cos(math.pi - m)
    mm_ = math.sin(math.pi - m) * m

    labels2d = labels.astype(jnp.int32).reshape(n, 1)

    kernel = functools.partial(
        _arcface_ce_kernel,
        n=int(n), tile_n=int(tile_n), s=float(s),
        cos_m=cos_m, sin_m=sin_m, th=th, mm=mm_,
        need_mask=(n % tile_n != 0))

    # Triple-buffer the logits stream only where VMEM is plentiful (v5e/v6e);
    # on v7x (64 MiB) stick to the default double buffer.
    logits_spec = pl.BlockSpec((tile_n, c), lambda i: (i, 0))
    if big_vmem:
        try:
            logits_spec = pl.BlockSpec((tile_n, c), lambda i: (i, 0),
                                       pipeline_mode=pl.Buffered(3))
        except TypeError:                    # older BlockSpec signature
            pass

    cost = pl.CostEstimate(
        flops=12 * n * c,
        transcendentals=2 * n * c,
        bytes_accessed=n * c * itemsize + n * 4 + num_tiles * 128 * 4)

    partials = pl.pallas_call(
        kernel,
        out_shape=jax.ShapeDtypeStruct((num_tiles, 1, 128), jnp.float32),
        grid_spec=pltpu.PrefetchScalarGridSpec(
            num_scalar_prefetch=0,
            grid=(num_tiles,),
            in_specs=[
                logits_spec,
                pl.BlockSpec((tile_n, 1), lambda i: (i, 0)),
            ],
            out_specs=pl.BlockSpec((1, 1, 128), lambda i: (i, 0, 0)),
        ),
        compiler_params=pltpu.CompilerParams(
            dimension_semantics=("parallel",),          # no cross-tile state
            vmem_limit_bytes=int(vmem_limit)),
        cost_estimate=cost,
    )(logits, labels2d)

    # Tiny final reduction + alpha mix in plain JAX (keeps the grid parallel
    # and avoids a long serial f32 accumulation chain).
    sums = jnp.sum(partials[:, 0, :2], axis=0)
    loss_ce = sums[0] / n
    loss_af = (sums[1] / n) / 2.0
    return alpha * loss_af + (1.0 - alpha) * loss_ce


def _reference(logits, labels, *, alpha=0.5, s=30.0, m=0.5):
    """Pure-JAX reference mirroring the torch module (for sanity check)."""
    x = logits.astype(jnp.float32)
    _, c = x.shape
    one_hot = jax.nn.one_hot(labels, c, dtype=jnp.float32)
    # nn.CrossEntropyLoss
    logp = jax.nn.log_softmax(x, axis=-1)
    loss_ce = jnp.mean(-jnp.sum(logp * one_hot, axis=-1))
    # ArcFaceLoss
    cos_m, sin_m = math.cos(m), math.sin(m)
    th, mm_ = math.cos(math.pi - m), math.sin(math.pi - m) * m
    cosine = x
    sine = jnp.sqrt(1.0 - cosine ** 2)
    phi = cosine * cos_m - sine * sin_m
    phi = jnp.where(cosine > th, phi, cosine - mm_)
    out = (one_hot * phi + (1.0 - one_hot) * cosine) * s
    logp2 = jax.nn.log_softmax(out, axis=-1)
    loss_af = jnp.mean(-jnp.sum(logp2 * one_hot, axis=-1)) / 2.0
    return alpha * loss_af + (1 - alpha) * loss_ce


if __name__ == "__main__":
    key = jax.random.PRNGKey(0)
    k1, k2 = jax.random.split(key)

    # Non-multiple-of-8 batch exercises the remainder-masking path.
    N, C = 19, 128
    # ArcFace expects cosine-similarity logits in [-1, 1].
    logits = jax.random.uniform(k1, (N, C), jnp.float32, minval=-1.0, maxval=1.0)
    labels = jax.random.randint(k2, (N,), 0, C, dtype=jnp.int32)

    ref = _reference(logits, labels)

    # Auto-sized tiles (>= 2 tiles so a v7x megacore can split the grid).
    loss = jax.block_until_ready(arcface_cross_entropy(logits, labels))
    assert jnp.allclose(loss, ref, rtol=1e-5, atol=1e-5), (loss, ref)

    # Force small tiles (with a partial last tile) to exercise the
    # parallel per-tile partial-sum path.
    loss_multi = jax.block_until_ready(
        arcface_cross_entropy(logits, labels, tile_n=8))
    assert jnp.allclose(loss_multi, ref, rtol=1e-5, atol=1e-5), (loss_multi, ref)

    # bf16 input path (halves HBM traffic; kernel upcasts to f32 in VMEM).
    logits_bf = logits.astype(jnp.bfloat16)
    ref_bf = _reference(logits_bf.astype(jnp.float32), labels)
    loss_bf = jax.block_until_ready(arcface_cross_entropy(logits_bf, labels))
    assert jnp.allclose(loss_bf, ref_bf, rtol=1e-5, atol=1e-5), (loss_bf, ref_bf)

    print("KERNEL_OK")
</pallas_src>

<mosaic_0001>
module attributes {stable_mosaic.version = 11 : i64} {
  func.func @_arcface_ce_kernel(%arg0: i32, %arg1: memref<16x128xf32, #tpu.memory_space<vmem>>, %arg2: memref<16x1xi32, #tpu.memory_space<vmem>>, %arg3: memref<1x1x128xf32, #tpu.memory_space<vmem>>) attributes {dimension_semantics = [#tpu.dimension_semantics<parallel>], iteration_bounds = array<i64: 2>, scalar_prefetch = 0 : i64, scratch_operands = 0 : i64, tpu.core_type = #tpu.core_type<tc>, window_params = [{transform_indices = @transform_0, window_bounds = array<i64: 16, 128>}, {transform_indices = @transform_1, window_bounds = array<i64: 16, 1>}, {transform_indices = @transform_2, window_bounds = array<i64: 1, 1, 128>}]} {
    %c0 = arith.constant 0 : index
    %c0_0 = arith.constant 0 : index
    %0 = vector.load %arg1[%c0, %c0_0] : memref<16x128xf32, #tpu.memory_space<vmem>>, vector<16x128xf32>
    %c0_1 = arith.constant 0 : index
    %c0_2 = arith.constant 0 : index
    %1 = vector.load %arg2[%c0_1, %c0_2] : memref<16x1xi32, #tpu.memory_space<vmem>>, vector<16x1xi32>
    %2 = tpu.iota {dimensions = array<i32: 1>} : vector<16x128xi32>
    %3 = vector.broadcast %1 : vector<16x1xi32> to vector<16x128xi32>
    %4 = arith.cmpi eq, %2, %3 : vector<16x128xi32>
    %cst = arith.constant 0.000000e+00 : f32
    %5 = vector.broadcast %cst : f32 to vector<16x128xf32>
    %6 = arith.select %4, %0, %5 : vector<16x128xi1>, vector<16x128xf32>
    %cst_3 = arith.constant dense<0.000000e+00> : vector<16xf32>
    %7 = vector.multi_reduction <add>, %6, %cst_3 [1] : vector<16x128xf32> to vector<16xf32>
    %8 = vector.shape_cast %7 : vector<16xf32> to vector<16x1xf32>
    %cst_4 = arith.constant dense<0xFF800000> : vector<16xf32>
    %9 = vector.multi_reduction <maximumf>, %0, %cst_4 [1] : vector<16x128xf32> to vector<16xf32>
    %10 = vector.shape_cast %9 : vector<16xf32> to vector<16x1xf32>
    %11 = vector.broadcast %10 : vector<16x1xf32> to vector<16x128xf32>
    %12 = arith.subf %0, %11 : vector<16x128xf32>
    %13 = math.exp %12 : vector<16x128xf32>
    %cst_5 = arith.constant dense<0.000000e+00> : vector<16xf32>
    %14 = vector.multi_reduction <add>, %13, %cst_5 [1] : vector<16x128xf32> to vector<16xf32>
    %15 = vector.shape_cast %14 : vector<16xf32> to vector<16x1xf32>
    %16 = math.log %15 : vector<16x1xf32>
    %17 = arith.addf %16, %10 : vector<16x1xf32>
    %18 = arith.subf %17, %8 : vector<16x1xf32>
    %19 = arith.mulf %8, %8 : vector<16x1xf32>
    %cst_6 = arith.constant 1.000000e+00 : f32
    %20 = vector.broadcast %cst_6 : f32 to vector<16x1xf32>
    %21 = arith.subf %20, %19 : vector<16x1xf32>
    %22 = math.sqrt %21 : vector<16x1xf32>
    %cst_7 = arith.constant 0.87758255 : f32
    %23 = vector.broadcast %cst_7 : f32 to vector<16x1xf32>
    %24 = arith.mulf %8, %23 : vector<16x1xf32>
    %cst_8 = arith.constant 0.47942555 : f32
    %25 = vector.broadcast %cst_8 : f32 to vector<16x1xf32>
    %26 = arith.mulf %22, %25 : vector<16x1xf32>
    %27 = arith.subf %24, %26 : vector<16x1xf32>
    %cst_9 = arith.constant -0.87758255 : f32
    %28 = vector.broadcast %cst_9 : f32 to vector<16x1xf32>
    %29 = arith.cmpf ogt, %8, %28 : vector<16x1xf32>
    %cst_10 = arith.constant 0.239712775 : f32
    %30 = vector.broadcast %cst_10 : f32 to vector<16x1xf32>
    %31 = arith.subf %8, %30 : vector<16x1xf32>
    %32 = arith.select %29, %27, %31 : vector<16x1xi1>, vector<16x1xf32>
    %33 = vector.broadcast %10 : vector<16x1xf32> to vector<16x128xf32>
    %34 = arith.subf %0, %33 : vector<16x128xf32>
    %cst_11 = arith.constant 3.000000e+01 : f32
    %35 = vector.broadcast %cst_11 : f32 to vector<16x128xf32>
    %36 = arith.mulf %35, %34 : vector<16x128xf32>
    %37 = math.exp %36 : vector<16x128xf32>
    %cst_12 = arith.constant 0.000000e+00 : f32
    %38 = vector.broadcast %cst_12 : f32 to vector<16x128xf32>
    %39 = arith.select %4, %38, %37 : vector<16x128xi1>, vector<16x128xf32>
    %cst_13 = arith.constant dense<0.000000e+00> : vector<16xf32>
    %40 = vector.multi_reduction <add>, %39, %cst_13 [1] : vector<16x128xf32> to vector<16xf32>
    %41 = vector.shape_cast %40 : vector<16xf32> to vector<16x1xf32>
    %cst_14 = arith.constant 3.000000e+01 : f32
    %42 = vector.broadcast %cst_14 : f32 to vector<16x1xf32>
    %43 = arith.mulf %42, %10 : vector<16x1xf32>
    %44 = arith.subf %32, %10 : vector<16x1xf32>
    %cst_15 = arith.constant 3.000000e+01 : f32
    %45 = vector.broadcast %cst_15 : f32 to vector<16x1xf32>
    %46 = arith.mulf %45, %44 : vector<16x1xf32>
    %47 = math.exp %46 : vector<16x1xf32>
    %48 = arith.addf %41, %47 : vector<16x1xf32>
    %49 = math.log %48 : vector<16x1xf32>
    %50 = arith.addf %43, %49 : vector<16x1xf32>
    %cst_16 = arith.constant 3.000000e+01 : f32
    %51 = vector.broadcast %cst_16 : f32 to vector<16x1xf32>
    %52 = arith.mulf %51, %32 : vector<16x1xf32>
    %53 = arith.subf %50, %52 : vector<16x1xf32>
    %c16_i32 = arith.constant 16 : i32
    %54 = arith.muli %arg0, %c16_i32 : i32
    %55 = tpu.iota {dimensions = array<i32: 0>} : vector<16x1xi32>
    %56 = vector.broadcast %54 : i32 to vector<16x1xi32>
    %57 = arith.addi %56, %55 : vector<16x1xi32>
    %c19_i32 = arith.constant 19 : i32
    %58 = vector.broadcast %c19_i32 : i32 to vector<16x1xi32>
    %59 = arith.cmpi slt, %57, %58 : vector<16x1xi32>
    %cst_17 = arith.constant 0.000000e+00 : f32
    %60 = vector.broadcast %cst_17 : f32 to vector<16x1xf32>
    %61 = arith.select %59, %18, %60 : vector<16x1xi1>, vector<16x1xf32>
    %cst_18 = arith.constant 0.000000e+00 : f32
    %62 = vector.broadcast %cst_18 : f32 to vector<16x1xf32>
    %63 = arith.select %59, %53, %62 : vector<16x1xi1>, vector<16x1xf32>
    %64 = vector.shape_cast %61 : vector<16x1xf32> to vector<1x16x1xf32>
    %cst_19 = arith.constant dense<0.000000e+00> : vector<1xf32>
    %65 = vector.multi_reduction <add>, %64, %cst_19 [1, 2] : vector<1x16x1xf32> to vector<1xf32>
    %66 = vector.shape_cast %65 : vector<1xf32> to vector<1x1x1xf32>
    %67 = vector.extract %66[0, 0, 0] : f32 from vector<1x1x1xf32>
    %68 = vector.shape_cast %63 : vector<16x1xf32> to vector<1x16x1xf32>
    %cst_20 = arith.constant dense<0.000000e+00> : vector<1xf32>
    %69 = vector.multi_reduction <add>, %68, %cst_20 [1, 2] : vector<1x16x1xf32> to vector<1xf32>
    %70 = vector.shape_cast %69 : vector<1xf32> to vector<1x1x1xf32>
    %71 = vector.extract %70[0, 0, 0] : f32 from vector<1x1x1xf32>
    %72 = tpu.iota {dimensions = array<i32: 2>} : vector<1x1x128xi32>
    %c0_i32 = arith.constant 0 : i32
    %73 = vector.broadcast %c0_i32 : i32 to vector<1x1x128xi32>
    %74 = arith.cmpi eq, %72, %73 : vector<1x1x128xi32>
    %c1_i32 = arith.constant 1 : i32
    %75 = vector.broadcast %c1_i32 : i32 to vector<1x1x128xi32>
    %76 = arith.cmpi eq, %72, %75 : vector<1x1x128xi32>
    %cst_21 = arith.constant 0.000000e+00 : f32
    %77 = vector.broadcast %71 : f32 to vector<1x1x128xf32>
    %78 = vector.broadcast %cst_21 : f32 to vector<1x1x128xf32>
    %79 = arith.select %76, %77, %78 : vector<1x1x128xi1>, vector<1x1x128xf32>
    %80 = vector.broadcast %67 : f32 to vector<1x1x128xf32>
    %81 = arith.select %74, %80, %79 : vector<1x1x128xi1>, vector<1x1x128xf32>
    %c0_22 = arith.constant 0 : index
    %c0_23 = arith.constant 0 : index
    %c0_24 = arith.constant 0 : index
    %82 = vector.load %arg3[%c0_22, %c0_23, %c0_24] : memref<1x1x128xf32, #tpu.memory_space<vmem>>, vector<1x1x128xf32>
    tpu.vector_store %arg3[%c0_22, %c0_23, %c0_24], %81 {strides = array<i32>} : memref<1x1x128xf32, #tpu.memory_space<vmem>>, vector<1x1x128xf32>,
    return
  }
  func.func @transform_0(%arg0: i32) -> (i32, i32) {
    %c0_i32 = arith.constant 0 : i32
    %c0_i32_0 = arith.constant 0 : i32
    return %arg0, %c0_i32 : i32, i32
  }
  func.func @transform_1(%arg0: i32) -> (i32, i32) {
    %c0_i32 = arith.constant 0 : i32
    %c0_i32_0 = arith.constant 0 : i32
    return %arg0, %c0_i32 : i32, i32
  }
  func.func @transform_2(%arg0: i32) -> (i32, i32, i32) {
    %c0_i32 = arith.constant 0 : i32
    %c0_i32_0 = arith.constant 0 : i32
    %c0_i32_1 = arith.constant 0 : i32
    return %arg0, %c0_i32, %c0_i32_0 : i32, i32, i32
  }
}

</mosaic_0001>

<llo_original>
// kernel: tpu_custom_call.1
$region0: #{tpu_custom_call.1}
  #allocation0 [shape = 'u32[]', space=smem, size = 0x4, offset = 0x4, fixed_abs, tag = 'smem constant byte address 0x4 - core index']
  #allocation1 [shape = 'u32[144,128]{1,0:T(1,128)}', space=vmem, size = 0x12000, scoped, tag = 'internal scratch']
  %s0 = inlined_call_operand.vmem [shape: f32[19,128], index: 0, kind: input, shape index: {}]
  %s1 = inlined_call_operand.vmem [shape: s32[19,1], index: 1, kind: input, shape index: {}]
  %s2 = inlined_call_operand.hbm [shape: f32[2,1,128], index: 2, kind: output, shape index: {}]
  %s3 = sld [smem:[#allocation0]]
  $region41: #{tpu_custom_call.1} parent=0
    _
  %s5 = ssub.s32 1, %s3
  %s6 = scalar_select 0, %s5, %s3
  $region1: #{tpu_custom_call.1} parent=0
    #allocation2 [shape = 'u8[1024]{0}', space=vmem, size = 0x400, scoped, tag = 'output window, operand 0']
    #allocation3 [shape = 's32[2]{0}', space=sflag, size = 0x8, scoped, tag = 'scoped memory for tpu_custom_call.1']
    %7 = vsyncpa [#allocation3], 0
    %s8 = scalar_lea.sflag [#allocation3], 1
    %9 = vsyncpa %s8, 0
    loop: start=0, step=1, limit=4
    $region2: #{tpu_custom_call.1} parent=1 // loop_pre_header
      _
    $region3: #{tpu_custom_call.1} parent=1 // loop_header
      %s11 = sphi 0, %s15
      %p12 = scmp.ge.s32.totalorder %s11, 4
      %s21 = sphi 0, %s23
      %s24 = sphi 0, %s21
      %s25 = sphi 0, %s24
      %s41 = sphi 0, %s25
      %s47 = sphi 0, %s49
      %s50 = sphi 0, %s47
      %s51 = sphi 0, %s50
      %s67 = sphi 0, %s51
      %s73 = sphi 0, %s75
      %s76 = sphi 0, %s73
      %s77 = sphi 0, %s76
      %s93 = sphi 0, %s77
    $region4: #{tpu_custom_call.1} parent=1 // loop_header_branch
      %14 = sbr.rel (%p12) target = $region8
    $region5: #{tpu_custom_call.1} parent=1 // loop_body
      %s16 = ssub.s32 %s11, 1
      %s17 = ssub.s32 %s11, 2
      %s18 = sadd.s32 %s11, 1
      %s19 = ssub.s32 %s11, %s18
      %p20 = scmp.eq.s32.totalorder %s19, 0
      %s22 = sadd.s32 %s21, 1
      %s23 = scalar_select %p20, %s21, %s22
      %p26 = pneg %p20
      %p27 = scmp.eq.s32.totalorder %s11, 1
      %p28 = por %p26, %p27
      %p29 = scmp.ne.s32.totalorder %s21, %s24
      %p30 = scmp.eq.s32.totalorder %s11, 0
      %p31 = por %p29, %p30
      %p32 = scmp.ne.s32.totalorder %s21, %s24
      %p33 = scmp.eq.s32.totalorder %s16, 1
      %p34 = por %p32, %p33
      %p35 = scmp.ne.s32.totalorder %s24, %s25
      %p36 = scmp.eq.s32.totalorder %s16, 0
      %p37 = por %p35, %p36
      %p38 = scmp.ne.s32.totalorder %s24, %s25
      %p39 = scmp.eq.s32.totalorder %s17, 1
      %p40 = por %p38, %p39
      %p42 = scmp.ne.s32.totalorder %s25, %s41
      %p43 = scmp.eq.s32.totalorder %s17, 0
      %p44 = por %p42, %p43
      %s45 = ssub.s32 %s11, %s18
      %p46 = scmp.eq.s32.totalorder %s45, 0
      %s48 = sadd.s32 %s47, 1
      %s49 = scalar_select %p46, %s47, %s48
      %p52 = pneg %p46
      %p53 = scmp.eq.s32.totalorder %s11, 1
      %p54 = por %p52, %p53
      %p55 = scmp.ne.s32.totalorder %s47, %s50
      %p56 = scmp.eq.s32.totalorder %s11, 0
      %p57 = por %p55, %p56
      %p58 = scmp.ne.s32.totalorder %s47, %s50
      %p59 = scmp.eq.s32.totalorder %s16, 1
      %p60 = por %p58, %p59
      %p61 = scmp.ne.s32.totalorder %s50, %s51
      %p62 = scmp.eq.s32.totalorder %s16, 0
      %p63 = por %p61, %p62
      %p64 = scmp.ne.s32.totalorder %s50, %s51
      %p65 = scmp.eq.s32.totalorder %s17, 1
      %p66 = por %p64, %p65
      %p68 = scmp.ne.s32.totalorder %s51, %s67
      %p69 = scmp.eq.s32.totalorder %s17, 0
      %p70 = por %p68, %p69
      %s71 = ssub.s32 %s11, %s18
      %p72 = scmp.eq.s32.totalorder %s71, 0
      %s74 = sadd.s32 %s73, 1
      %s75 = scalar_select %p72, %s73, %s74
      %p78 = pneg %p72
      %p79 = scmp.eq.s32.totalorder %s11, 1
      %p80 = por %p78, %p79
      %p81 = scmp.ne.s32.totalorder %s73, %s76
      %p82 = scmp.eq.s32.totalorder %s11, 0
      %p83 = por %p81, %p82
      %p84 = scmp.ne.s32.totalorder %s73, %s76
      %p85 = scmp.eq.s32.totalorder %s16, 1
      %p86 = por %p84, %p85
      %p87 = scmp.ne.s32.totalorder %s76, %s77
      %p88 = scmp.eq.s32.totalorder %s16, 0
      %p89 = por %p87, %p88
      %p90 = scmp.ne.s32.totalorder %s76, %s77
      %p91 = scmp.eq.s32.totalorder %s17, 1
      %p92 = por %p90, %p91
      %p94 = scmp.ne.s32.totalorder %s77, %s93
      %p95 = scmp.eq.s32.totalorder %s17, 0
      %p96 = por %p94, %p95
      %p97 = scmp.le.s32.totalorder 1, %s11
      %p98 = scmp.lt.s32.totalorder %s11, 3
      %p99 = pnand %p97, %p98
      %p100 = pneg %p99
      // Predicated region
      $region9: #{tpu_custom_call.1} parent=5 // pred_check
        _
      $region10: #{tpu_custom_call.1} parent=5 // pred_check_branch
        %102 = sbr.rel (%p99) target = $region12
      $region11: #{tpu_custom_call.1} parent=5 // pred_region
        %s103 = ssub.s32 %s11, 1
      $region12: #{tpu_custom_call.1} parent=5 // pred_fallthru
        _
      %p104 = scmp.lt.s32.totalorder %s11, 2
      // Predicated region
      $region13: #{tpu_custom_call.1} parent=5 // pred_check
        %p105 = pneg %p104
      $region14: #{tpu_custom_call.1} parent=5 // pred_check_branch
        %107 = sbr.rel (%p105) target = $region16
      $region15: #{tpu_custom_call.1} parent=5 // pred_region
        // Predicated region
        $region17: #{tpu_custom_call.1} parent=15 // pred_check
          %p108 = pneg %p31
        $region18: #{tpu_custom_call.1} parent=15 // pred_check_branch
          %110 = sbr.rel (%p108) target = $region20
        $region19: #{tpu_custom_call.1} parent=15 // pred_region
          %s111 = smul.u32 2, %s11
          %s112 = ssub.s32 3, %s111
          %p113 = scmp.lt.s32.totalorder %s112, 2
          %s114 = scalar_select %p113, %s112, 2
          %s115 = smul.u32 128, %s114
          %p116 = scmp.lt.s32.totalorder %s111, 2
          %s117 = scalar_select %p116, %s111, 2
          %s118 = smul.addr %s117, 8
          %s119 = scalar_lea.vmem %s0, %s118
          %s120 = smul.u32 2, %s11
          %s121 = ssub.s32 3, %s120
          %p122 = scmp.lt.s32.totalorder %s121, 2
          %s123 = scalar_select %p122, %s121, 2
          %s124 = smul.u32 128, %s123
        $region20: #{tpu_custom_call.1} parent=15 // pred_fallthru
          _
        // Predicated region
        $region21: #{tpu_custom_call.1} parent=15 // pred_check
          %p125 = pneg %p57
        $region22: #{tpu_custom_call.1} parent=15 // pred_check_branch
          %127 = sbr.rel (%p125) target = $region24
        $region23: #{tpu_custom_call.1} parent=15 // pred_region
          %s128 = smul.u32 2, %s11
          %s129 = ssub.s32 3, %s128
          %p130 = scmp.lt.s32.totalorder %s129, 2
          %s131 = scalar_select %p130, %s129, 2
          %s132 = smul.u32 128, %s131
          %p133 = scmp.lt.s32.totalorder %s128, 2
          %s134 = scalar_select %p133, %s128, 2
          %s135 = smul.addr %s134, 8
          %s136 = scalar_lea.vmem %s1, %s135
          %s137 = smul.u32 2, %s11
          %s138 = ssub.s32 3, %s137
          %p139 = scmp.lt.s32.totalorder %s138, 2
          %s140 = scalar_select %p139, %s138, 2
          %s141 = smul.u32 128, %s140
        $region24: #{tpu_custom_call.1} parent=15 // pred_fallthru
          _
      $region16: #{tpu_custom_call.1} parent=5 // pred_fallthru
        _
      %p142 = scmp.le.s32.totalorder 1, %s11
      %p143 = scmp.lt.s32.totalorder %s11, 3
      %p144 = pnand %p142, %p143
      %p145 = pneg %p144
      // Predicated region
      $region25: #{tpu_custom_call.1} parent=5 // pred_check
        _
      $region26: #{tpu_custom_call.1} parent=5 // pred_check_branch
        %147 = sbr.rel (%p144) target = $region28
      $region27: #{tpu_custom_call.1} parent=5 // pred_region
        %s148 = ssub.s32 %s11, 1
        %s149 = smul.u32 2, %s16
        %s150 = ssub.s32 3, %s149
        %p151 = scmp.lt.s32.totalorder %s150, 2
        %s152 = scalar_select %p151, %s150, 2
        %s153 = smul.u32 128, %s152
        %p154 = scmp.lt.s32.totalorder %s149, 2
        %s155 = scalar_select %p154, %s149, 2
        %s156 = smul.addr %s155, 8
        %s157 = scalar_lea.vmem %s0, %s156
        %p158 = pneg %p37
        %p159 = pneg %p34
        %s160 = smul.u32 2, %s16
        %s161 = ssub.s32 3, %s160
        %p162 = scmp.lt.s32.totalorder %s161, 2
        %s163 = scalar_select %p162, %s161, 2
        %s164 = smul.u32 128, %s163
        %p165 = scmp.lt.s32.totalorder %s160, 2
        %s166 = scalar_select %p165, %s160, 2
        %s167 = smul.addr %s166, 8
        %s168 = scalar_lea.vmem %s1, %s167
        %p169 = pneg %p63
        %p170 = pneg %p60
        %p171 = pneg %p89
        %p172 = pneg %p86
        %s173 = sand.u32 %s76, 1
        %s174 = scalar_lea.sflag [#allocation3], %s173
        %s175 = sand.u32 %s76, 1
        %s176 = scalar_lea.vmem [#allocation2], %s175
        %s177 = smul.u32 2, %s16
        %s178 = ssub.s32 3, %s177
        %p179 = scmp.lt.s32.totalorder %s178, 2
        %s180 = scalar_select %p179, %s178, 2
        %s181 = smul.u32 128, %s180
        %p182 = scmp.lt.s32.totalorder %s177, 2
        %s183 = scalar_select %p182, %s177, 2
        %s184 = smul.addr %s183, 8
        %s185 = scalar_lea.vmem %s0, %s184
        %s186 = smul.u32 2, %s16
        %s187 = ssub.s32 3, %s186
        %p188 = scmp.lt.s32.totalorder %s187, 2
        %s189 = scalar_select %p188, %s187, 2
        %s190 = smul.u32 128, %s189
        %s191 = smul.u32 2, %s16
        %s192 = ssub.s32 3, %s191
        %p193 = scmp.lt.s32.totalorder %s192, 2
        %s194 = scalar_select %p193, %s192, 2
        %s195 = smul.u32 128, %s194
        %p196 = scmp.lt.s32.totalorder %s191, 2
        %s197 = scalar_select %p196, %s191, 2
        %s198 = smul.addr %s197, 8
        %s199 = scalar_lea.vmem %s1, %s198
        %s200 = smul.u32 2, %s16
        %s201 = ssub.s32 3, %s200
        %p202 = scmp.lt.s32.totalorder %s201, 2
        %s203 = scalar_select %p202, %s201, 2
        %s204 = smul.u32 128, %s203
        %v205 = vld [vmem:[%s185] sm:$0xff]
        %v206 = vld [vmem:[%s185 + $0x8] sm:$0xff]
        %v207 = vld [vmem:[%s199] sm:$0xff]
        %v208 = vld [vmem:[%s199 + $0x8] sm:$0xff]
        %v209 = vlaneseq
        %v210 = vand.u32 %v209, 127
        %211 = vset.pattern.permute.xlu0 0
        %212 = vperm.xlu0 %211, %v207
        %v213 = vpop.permute.xlu0 %212
        %214 = vset.pattern.permute.xlu0 0
        %215 = vperm.xlu0 %214, %v208
        %v216 = vpop.permute.xlu0 %215
        %vm217 = vcmp.eq.s32.totalorder %v210, %v213
        %vm218 = vcmp.eq.s32.totalorder %v210, %v216
        %v219 = vsel %vm217, %v205, 0.0
        %v220 = vsel %vm218, %v206, 0.0
        %221 = vadd.xlane.f32.xlu0 %v219
        %v222 = vpop.xlane.xlu0 %221
        %223 = vadd.xlane.f32.xlu0 %v220
        %v224 = vpop.xlane.xlu0 %223
        %225 = vmax.xlane.f32.xlu0 %v205
        %v226 = vpop.xlane.xlu0 %225
        %227 = vmax.xlane.f32.xlu0 %v206
        %v228 = vpop.xlane.xlu0 %227
        %v229 = vsub.f32 %v205, %v226
        %v230 = vsub.f32 %v206, %v228
        %v231 = vmul.f32 %v229, 1.442695
        %v232 = vpow.pop %v231
        %v233 = vmul.f32 %v230, 1.442695
        %v234 = vpow.pop %v233
        %235 = vadd.xlane.f32.xlu0 %v232
        %v236 = vpop.xlane.xlu0 %235
        %237 = vadd.xlane.f32.xlu0 %v234
        %v238 = vpop.xlane.xlu0 %237
        %v239 = vlog2.pop %v236
        %v240 = vmul.f32 %v239, 0.6931472
        %v241 = vlog2.pop %v238
        %v242 = vmul.f32 %v241, 0.6931472
        %v243 = vadd.f32 %v240, %v226
        %v244 = vadd.f32 %v242, %v228
        %v245 = vsub.f32 %v243, %v222
        %v246 = vsub.f32 %v244, %v224
        %v247 = vmul.f32 %v222, %v222
        %v248 = vmul.f32 %v224, %v224
        %v249 = vsub.f32 1.0, %v247
        %v250 = vsub.f32 1.0, %v248
        %v251 = vrsqrt.pop %v249
        %v252 = vmul.f32 %v249, %v251
        %vm253 = vcmp.eq.f32.partialorder %v249, inf
        %v254 = vsel %vm253, %v249, %v252
        %vm255 = vcmp.eq.f32.partialorder %v249, 0.0
        %v256 = vand.u32 %v249, 2147483648
        %v257 = vsel %vm255, %v256, %v254
        %v258 = vrsqrt.pop %v250
        %v259 = vmul.f32 %v250, %v258
        %vm260 = vcmp.eq.f32.partialorder %v250, inf
        %v261 = vsel %vm260, %v250, %v259
        %vm262 = vcmp.eq.f32.partialorder %v250, 0.0
        %v263 = vand.u32 %v250, 2147483648
        %v264 = vsel %vm262, %v263, %v261
        %v265 = vmul.f32 %v222, 0.87758255
        %v266 = vmul.f32 %v224, 0.87758255
        %v267 = vmul.f32 %v257, 0.47942555
        %v268 = vmul.f32 %v264, 0.47942555
        %v269 = vsub.f32 %v265, %v267
        %v270 = vsub.f32 %v266, %v268
        %vm271 = vcmp.gt.f32.partialorder %v222, -0.87758255
        %vm272 = vcmp.gt.f32.partialorder %v224, -0.87758255
        %v273 = vsub.f32 %v222, 0.23971277
        %v274 = vsub.f32 %v224, 0.23971277
        %v275 = vsel %vm271, %v269, %v273
        %v276 = vsel %vm272, %v270, %v274
        %v277 = vmul.f32 %v229, 30.0
        %v278 = vmul.f32 %v230, 30.0
        %v279 = vmul.f32 %v277, 1.442695
        %v280 = vpow.pop %v279
        %v281 = vmul.f32 %v278, 1.442695
        %v282 = vpow.pop %v281
        %v283 = vsel %vm217, 0.0, %v280
        %v284 = vsel %vm218, 0.0, %v282
        %285 = vadd.xlane.f32.xlu0 %v283
        %v286 = vpop.xlane.xlu0 %285
        %287 = vadd.xlane.f32.xlu0 %v284
        %v288 = vpop.xlane.xlu0 %287
        %v289 = vmul.f32 %v226, 30.0
        %v290 = vmul.f32 %v228, 30.0
        %v291 = vsub.f32 %v275, %v226
        %v292 = vsub.f32 %v276, %v228
        %v293 = vmul.f32 %v291, 30.0
        %v294 = vmul.f32 %v292, 30.0
        %v295 = vmul.f32 %v293, 1.442695
        %v296 = vpow.pop %v295
        %v297 = vmul.f32 %v294, 1.442695
        %v298 = vpow.pop %v297
        %v299 = vadd.f32 %v286, %v296
        %v300 = vadd.f32 %v288, %v298
        %v301 = vlog2.pop %v299
        %v302 = vmul.f32 %v301, 0.6931472
        %v303 = vlog2.pop %v300
        %v304 = vmul.f32 %v303, 0.6931472
        %v305 = vadd.f32 %v289, %v302
        %v306 = vadd.f32 %v290, %v304
        %v307 = vmul.f32 %v275, 30.0
        %v308 = vmul.f32 %v276, 30.0
        %v309 = vsub.f32 %v305, %v307
        %v310 = vsub.f32 %v306, %v308
        %s311 = smul.u32 %s16, 16
        %v312 = vlaneseq
        %v313 = vshrl.u32 %v312, 7
        %v314 = vadd.s32 %v313, 8
        %v315 = vstv %s311
        %v316 = vadd.s32 %v315, %v313
        %v317 = vadd.s32 %v315, %v314
        %vm318 = vcmp.lt.s32.totalorder %v316, 19
        %vm319 = vcmp.lt.s32.totalorder %v317, 19
        %v320 = vsel %vm318, %v245, 0.0
        %v321 = vsel %vm319, %v246, 0.0
        %v322 = vsel %vm318, %v309, 0.0
        %v323 = vsel %vm319, %v310, 0.0
        %vm324 = vcmask 7168
        %v325 = vsel %vm324, %v320, 0.0
        %v326 = vsel %vm324, %v321, 0.0
        %v327 = vadd.f32 %v325, %v326
        %328 = vadd.xlane.f32.xlu0 %v327
        %v329 = vpop.xlane.xlu0 %328
        %v330 = vrot.slane %v329, 4
        %v331 = vadd.f32 %v329, %v330
        %v332 = vrot.slane %v331, 2
        %v333 = vadd.f32 %v331, %v332
        %v334 = vrot.slane %v333, 1
        %v335 = vadd.f32 %v333, %v334
        %s336 = vtos %v335
        %v337 = vsel %vm324, %v322, 0.0
        %v338 = vsel %vm324, %v323, 0.0
        %v339 = vadd.f32 %v337, %v338
        %340 = vadd.xlane.f32.xlu0 %v339
        %v341 = vpop.xlane.xlu0 %340
        %v342 = vrot.slane %v341, 4
        %v343 = vadd.f32 %v341, %v342
        %v344 = vrot.slane %v343, 2
        %v345 = vadd.f32 %v343, %v344
        %v346 = vrot.slane %v345, 1
        %v347 = vadd.f32 %v345, %v346
        %s348 = vtos %v347
        %vm349 = vcmp.eq.s32.totalorder %v210, 0
        %vm350 = vcmp.eq.s32.totalorder %v210, 1
        %v351 = vstv %s348
        %v352 = vsel %vm350, %v351, 0.0
        %v353 = vstv %s336
        %v354 = vsel %vm349, %v353, %v352
        %355 = vst [vmem:[%s176] sm:$0x1] %v354
        %s356 = sand.u32 %s76, 1
        %s357 = scalar_lea.sflag [#allocation3], %s356
        %s358 = sand.u32 %s76, 1
        %s359 = scalar_lea.vmem [#allocation2], %s358
        // Predicated region
        $region29: #{tpu_custom_call.1} parent=27 // pred_check
          %p360 = pneg %p86
        $region30: #{tpu_custom_call.1} parent=27 // pred_check_branch
          %362 = sbr.rel (%p360) target = $region32
        $region31: #{tpu_custom_call.1} parent=27 // pred_region
          %s364 = ssub.s32 16, 16
          %365 = vsyncadd %s357, %s364
          %s366 = smul.addr %s16, 16
          %s367 = scalar_lea.hbm %s2, %s366
          %s369 = sshll.u32 %s359, 4
          %s370 = int_to_ptr.vmem [resolvable:$true] %s369
          %372 = dma.vmem_to_hbm [thread:$0]  %s370, 16, %s367, %s357
        $region32: #{tpu_custom_call.1} parent=27 // pred_fallthru
          _
      $region28: #{tpu_custom_call.1} parent=5 // pred_fallthru
        _
      %p373 = scmp.le.s32.totalorder 2, %s11
      // Predicated region
      $region33: #{tpu_custom_call.1} parent=5 // pred_check
        %p374 = pneg %p373
      $region34: #{tpu_custom_call.1} parent=5 // pred_check_branch
        %376 = sbr.rel (%p374) target = $region36
      $region35: #{tpu_custom_call.1} parent=5 // pred_region
        %s377 = ssub.s32 %s11, 2
        // Predicated region
        $region37: #{tpu_custom_call.1} parent=35 // pred_check
          %p378 = pneg %p92
        $region38: #{tpu_custom_call.1} parent=35 // pred_check_branch
          %380 = sbr.rel (%p378) target = $region40
        $region39: #{tpu_custom_call.1} parent=35 // pred_region
          %s381 = sand.u32 %s77, 1
          %s382 = scalar_lea.sflag [#allocation3], %s381
          %s383 = sand.u32 %s77, 1
          %s384 = scalar_lea.vmem [#allocation2], %s383
          %385 = dma.done %s382, 16
        $region40: #{tpu_custom_call.1} parent=35 // pred_fallthru
          _
      $region36: #{tpu_custom_call.1} parent=5 // pred_fallthru
        _
    $region6: #{tpu_custom_call.1} parent=1 // loop_footer
      %s15 = sadd.s32 1, %s11
    $region7: #{tpu_custom_call.1} parent=1 // loop_footer_branch
      %10 = sbr.rel target = $region3
    $region8: #{tpu_custom_call.1} parent=1 // loop_exit
      _
    %386 = vsyncpa [#allocation3], 1
    %s387 = scalar_lea.sflag [#allocation3], 1
    %388 = vsyncpa %s387, 1

</llo_original>
